<compile_context>
chip_gen: v6e
topology: v6e:2x2x1
jax: 0.10.0
libtpu: 0.0.40
codegen_flags: <defaults>
</compile_context>

<pallas_src>
import numpy as np
import jax
import jax.numpy as jnp
from jax.experimental import pallas as pl
from jax.experimental.pallas import tpu as pltpu

# ---- model hyper-parameters ----
IN_CH = 9
OUT_CH = 9          # adjusted from 8 (see TODO above)
GROUPS = 3
K = 3
DIL = 2
STRIDE = 1
PAD = 0

CI_PG = IN_CH // GROUPS     # in channels per group  (3)
CO_PG = OUT_CH // GROUPS    # out channels per group (3)
HALO = DIL * (K - 1)        # left zero-halo per batch segment (4)

CI_PAD = 16                 # input channels padded to a sublane multiple
OUT_PAD = 16                # output channels padded to a sublane multiple
LANE_TARGET = 4096          # target output lanes per grid step


def _convtr_sigmoid_kernel(x_ref, w_ref, o_ref):
    """Fused grouped transposed-conv1d + sigmoid on a lane-packed batch block.

    x_ref : (CI_PAD, W)          f32  packed input; per 128*-lane segment: [HALO zeros][x][zeros]
    w_ref : (OUT_PAD, K*CI_PAD)  f32  block-diagonal dense weight (zero-padded columns/rows)
    o_ref : (OUT_PAD, W)         f32  lane/sublane-dense output slab
    """
    xp = x_ref[...]                                             # (CI_PAD, W)

    # im2col: tap k is xp shifted LEFT by (HALO - k*DIL) lanes, zero-filled at the tail.
    # x_unf[k*CI_PAD + c, u] == x[c, u - k*DIL] within each batch segment (0 out of range).
    taps = []
    for k in range(K):
        s = HALO - k * DIL                                      # 4, 2, 0
        if s == 0:
            taps.append(xp)
        else:
            taps.append(jnp.concatenate(
                [xp[:, s:], jnp.zeros((CI_PAD, s), jnp.float32)], axis=-1))
    x_unf = jnp.concatenate(taps, axis=0)                       # (K*CI_PAD, W), sublane-aligned

    # Single contraction: y[o, u] = sum_{k,c} W_dense[o, k*CI_PAD+c] * x[c, u - k*DIL]
    y = jnp.dot(w_ref[...], x_unf, preferred_element_type=jnp.float32)   # (OUT_PAD, W)

    o_ref[...] = jax.nn.sigmoid(y)


def build_dense_weight(w):
    """PyTorch ConvTranspose1d weight (IN_CH, CO_PG, K) -> block-diagonal (OUT_PAD, K*CI_PAD).

    Built ONCE at init time (numpy), not per forward.  Padded rows/columns stay zero.
    """
    w = np.asarray(w, np.float32)
    wd = np.zeros((OUT_PAD, K * CI_PAD), np.float32)
    for k in range(K):
        for g in range(GROUPS):
            blk = w[g * CI_PG:(g + 1) * CI_PG, :, k].T          # (CO_PG, CI_PG)
            wd[g * CO_PG:(g + 1) * CO_PG,
               k * CI_PAD + g * CI_PG: k * CI_PAD + (g + 1) * CI_PG] = blk
    return jnp.asarray(wd)


@jax.jit
def model_forward(x, w_dense):
    """x: (B, IN_CH, L_in) f32.  w_dense: (OUT_PAD, K*CI_PAD) f32 (from build_dense_weight)."""
    x = x.astype(jnp.float32)
    B, _, L_in = x.shape
    L_out = (L_in - 1) * STRIDE - 2 * PAD + DIL * (K - 1) + 1

    # Per-batch lane segment [HALO zeros][x][zeros]: multiple of 128 and long enough that every
    # valid output's tap reads stay inside its own segment / the next segment's leading zeros.
    SEG = ((L_in + 2 * HALO + 127) // 128) * 128
    segs_per_step = max(1, min(B, LANE_TARGET // SEG))
    n_steps = -(-B // segs_per_step)
    b_pad = n_steps * segs_per_step
    w_step = segs_per_step * SEG

    # Single fused prep pass: (B, IN_CH, L_in) -> (CI_PAD, b_pad*SEG)
    xt = jnp.transpose(x, (1, 0, 2))                            # (IN_CH, B, L_in)
    xt = jnp.pad(xt, ((0, CI_PAD - IN_CH),
                      (0, b_pad - B),
                      (HALO, SEG - HALO - L_in)))
    x_packed = xt.reshape(CI_PAD, b_pad * SEG)

    out = pl.pallas_call(
        _convtr_sigmoid_kernel,
        out_shape=jax.ShapeDtypeStruct((OUT_PAD, b_pad * SEG), jnp.float32),
        grid=(n_steps,),
        in_specs=[pl.BlockSpec((CI_PAD, w_step), lambda j: (0, j)),
                  pl.BlockSpec((OUT_PAD, K * CI_PAD), lambda j: (0, 0))],
        out_specs=pl.BlockSpec((OUT_PAD, w_step), lambda j: (0, j)),
        compiler_params=pltpu.CompilerParams(dimension_semantics=("parallel",)),
    )(x_packed, w_dense)

    # Unpack: (OUT_PAD, b_pad*SEG) -> (B, OUT_CH, L_out).  Padded lanes hold sigmoid(0)=0.5 and
    # padded channels/batches are dropped here (negligible at these sizes; fold into the
    # consumer if L grows large).
    out = out.reshape(OUT_PAD, b_pad, SEG).transpose(1, 0, 2)
    return out[:B, :OUT_CH, :L_out]


def _ref_forward(x, w):
    """Pure numpy reference of grouped ConvTranspose1d(dilation=2) + sigmoid."""
    x = np.asarray(x, np.float32)
    w = np.asarray(w, np.float32)
    B, _, L_in = x.shape
    L_out = (L_in - 1) * STRIDE - 2 * PAD + DIL * (K - 1) + 1
    y = np.zeros((B, OUT_CH, L_out), np.float32)
    for b in range(B):
        for g in range(GROUPS):
            for d in range(CO_PG):
                for c in range(CI_PG):
                    for k in range(K):
                        for s in range(L_in):
                            y[b, g * CO_PG + d, s * STRIDE + k * DIL] += (
                                x[b, g * CI_PG + c, s] * w[g * CI_PG + c, d, k])
    return 1.0 / (1.0 + np.exp(-y))


if __name__ == "__main__":
    key = jax.random.PRNGKey(0)
    kx, kw = jax.random.split(key)

    # deterministic weight init, PyTorch ConvTranspose1d weight layout
    # (in_channels, out_channels // groups, kernel_size)
    bound = 1.0 / np.sqrt(CI_PG * K)
    w = jax.random.uniform(kw, (IN_CH, CO_PG, K), dtype=jnp.float32,
                           minval=-bound, maxval=bound)
    w_dense = build_dense_weight(w)            # init-time constant

    # matches x1 = torch.randn(1, 9, 16)
    x = jax.random.normal(kx, (1, IN_CH, 16), dtype=jnp.float32)
    out = jax.block_until_ready(model_forward(x, w_dense))
    np.testing.assert_allclose(np.asarray(out),
                               _ref_forward(np.asarray(x), np.asarray(w)),
                               rtol=1e-3, atol=2e-3)

    # also exercise multi-segment lane packing (several batch elements in one grid step)
    x5 = jax.random.normal(jax.random.PRNGKey(1), (5, IN_CH, 16), dtype=jnp.float32)
    out5 = jax.block_until_ready(model_forward(x5, w_dense))
    np.testing.assert_allclose(np.asarray(out5),
                               _ref_forward(np.asarray(x5), np.asarray(w)),
                               rtol=1e-3, atol=2e-3)

    print("KERNEL_OK")
</pallas_src>

<mosaic_0001>
module attributes {stable_mosaic.version = 11 : i64} {
  func.func @_convtr_sigmoid_kernel(%arg0: i32, %arg1: memref<16x128xf32, #tpu.memory_space<vmem>>, %arg2: memref<16x48xf32, #tpu.memory_space<vmem>>, %arg3: memref<16x128xf32, #tpu.memory_space<vmem>>) attributes {dimension_semantics = [#tpu.dimension_semantics<parallel>], iteration_bounds = array<i64: 1>, scalar_prefetch = 0 : i64, scratch_operands = 0 : i64, tpu.core_type = #tpu.core_type<tc>, window_params = [{transform_indices = @transform_0, window_bounds = array<i64: 16, 128>}, {pipeline_mode = #tpu.pipeline_mode<synchronous>, transform_indices = @transform_1, window_bounds = array<i64: 16, 48>}, {transform_indices = @transform_2, window_bounds = array<i64: 16, 128>}]} {
    %c0 = arith.constant 0 : index
    %c0_0 = arith.constant 0 : index
    %0 = vector.load %arg1[%c0, %c0_0] : memref<16x128xf32, #tpu.memory_space<vmem>>, vector<16x128xf32>
    %1 = vector.extract_strided_slice %0 {offsets = [0, 4], sizes = [16, 124], strides = [1, 1]} : vector<16x128xf32> to vector<16x124xf32>
    %cst = arith.constant 0.000000e+00 : f32
    %2 = vector.broadcast %cst : f32 to vector<16x4xf32>
    %3 = tpu.concatenate %1, %2 in 1 : vector<16x124xf32>, vector<16x4xf32> -> vector<16x128xf32>
    %4 = vector.extract_strided_slice %0 {offsets = [0, 2], sizes = [16, 126], strides = [1, 1]} : vector<16x128xf32> to vector<16x126xf32>
    %cst_1 = arith.constant 0.000000e+00 : f32
    %5 = vector.broadcast %cst_1 : f32 to vector<16x2xf32>
    %6 = tpu.concatenate %4, %5 in 1 : vector<16x126xf32>, vector<16x2xf32> -> vector<16x128xf32>
    %7 = tpu.concatenate %3, %6, %0 in 0 : vector<16x128xf32>, vector<16x128xf32>, vector<16x128xf32> -> vector<48x128xf32>
    %c0_2 = arith.constant 0 : index
    %c0_3 = arith.constant 0 : index
    %8 = vector.load %arg2[%c0_2, %c0_3] : memref<16x48xf32, #tpu.memory_space<vmem>>, vector<16x48xf32>
    %cst_4 = arith.constant dense<0.000000e+00> : vector<16x128xf32>
    %9 = tpu.matmul %8, %7, %cst_4 {dimension_numbers = #tpu.dot_dimension_numbers<[1], [0], [0], [1], [0, 0, 1, 1], [], []>} : vector<16x48xf32>, vector<48x128xf32>, vector<16x128xf32> -> vector<16x128xf32>
    %10 = arith.negf %9 : vector<16x128xf32>
    %11 = math.exp %10 : vector<16x128xf32>
    %cst_5 = arith.constant 1.000000e+00 : f32
    %12 = vector.broadcast %cst_5 : f32 to vector<16x128xf32>
    %13 = arith.addf %12, %11 : vector<16x128xf32>
    %14 = arith.divf %12, %13 : vector<16x128xf32>
    %c0_6 = arith.constant 0 : index
    %c0_7 = arith.constant 0 : index
    %15 = vector.load %arg3[%c0_6, %c0_7] : memref<16x128xf32, #tpu.memory_space<vmem>>, vector<16x128xf32>
    tpu.vector_store %arg3[%c0_6, %c0_7], %14 {strides = array<i32>} : memref<16x128xf32, #tpu.memory_space<vmem>>, vector<16x128xf32>,
    return
  }
  func.func @transform_0(%arg0: i32) -> (i32, i32) {
    %c0_i32 = arith.constant 0 : i32
    %c0_i32_0 = arith.constant 0 : i32
    return %c0_i32, %arg0 : i32, i32
  }
  func.func @transform_1(%arg0: i32) -> (i32, i32) {
    %c0_i32 = arith.constant 0 : i32
    %c0_i32_0 = arith.constant 0 : i32
    %c0_i32_1 = arith.constant 0 : i32
    return %c0_i32, %c0_i32_0 : i32, i32
  }
  func.func @transform_2(%arg0: i32) -> (i32, i32) {
    %c0_i32 = arith.constant 0 : i32
    %c0_i32_0 = arith.constant 0 : i32
    return %c0_i32, %arg0 : i32, i32
  }
}

</mosaic_0001>

<llo_original>
// kernel: model_forward.1
$region0: #{model_forward.1}
  #allocation0 [shape = 'u32[]', space=smem, size = 0x4, offset = 0x4, fixed_abs, tag = 'smem constant byte address 0x4 - core index']
  #allocation1 [shape = 'u32[144,128]{1,0:T(1,128)}', space=vmem, size = 0x12000, scoped, tag = 'internal scratch']
  %s0 = inlined_call_operand.vmem [shape: f32[16,128], index: 0, kind: input, shape index: {}]
  %s1 = inlined_call_operand.vmem [shape: f32[16,48], index: 1, kind: input, shape index: {}]
  %s2 = inlined_call_operand.vmem [shape: f32[16,128], index: 2, kind: output, shape index: {}]
  %s3 = sld [smem:[#allocation0]]
  $region18: #{model_forward.1} parent=0
    _
  %s5 = ssub.s32 1, %s3
  %s6 = scalar_select 0, %s5, %s3
  // Predicated region
  $region2: #{model_forward.1} parent=0 // pred_check
    _
  $region3: #{model_forward.1} parent=0 // pred_check_branch
    %8 = sbr.rel (0) target = $region5
  $region4: #{model_forward.1} parent=0 // pred_region
    _
  $region5: #{model_forward.1} parent=0 // pred_fallthru
    _
  // Predicated region
  $region6: #{model_forward.1} parent=0 // pred_check
    _
  $region7: #{model_forward.1} parent=0 // pred_check_branch
    %10 = sbr.rel (0) target = $region9
  $region8: #{model_forward.1} parent=0 // pred_region
    _
  $region9: #{model_forward.1} parent=0 // pred_fallthru
    _
  %v11 = vld [vmem:[%s0] sm:$0xff]
  %v12 = vld [vmem:[%s0 + $0x8] sm:$0xff]
  %15 = vrot.lane.b32.xlu0 %v11, 124
  %v16 = vpop.permute.xlu0 %15
  %17 = vrot.lane.b32.xlu0 %v12, 124
  %v18 = vpop.permute.xlu0 %17
  %vm21 = vcmask 1014784
  %v22 = vsel %vm21, %v16, 0.0
  %v23 = vsel %vm21, %v18, 0.0
  %24 = vrot.lane.b32.xlu0 %v11, 126
  %v25 = vpop.permute.xlu0 %24
  %26 = vrot.lane.b32.xlu0 %v12, 126
  %v27 = vpop.permute.xlu0 %26
  %vm30 = vcmask 1031168
  %v31 = vsel %vm30, %v25, 0.0
  %v32 = vsel %vm30, %v27, 0.0
  %v33 = vld [vmem:[%s1] sm:$0xff]
  %v34 = vld [vmem:[%s1 + $0x8] sm:$0xff]
  %vm35 = vcmask 392192
  %v37 = vsel %vm35, %v33, 0
  %v40 = vsel %vm35, %v34, 0
  %42 = vmatprep.subr.mxu0 0.0
  %43 = vmatpush1.msra.mxu0 0.0
  %44 = vmatprep.subr.mxu0 0.0
  %45 = vmatpush1.msra.mxu0 0.0
  %46 = vmatprep.subr.mxu0 0.0
  %47 = vmatpush1.msra.mxu0 0.0
  %48 = vmatprep.subr.mxu0 0.0
  %49 = vmatpush1.msra.mxu0 0.0
  %50 = vmatprep.subr.mxu0 0.0
  %51 = vmatpush1.msra.mxu0 0.0
  %52 = vmatprep.subr.mxu0 0.0
  %53 = vmatpush1.msra.mxu0 0.0
  %54 = vmatprep.subr.mxu0 0.0
  %55 = vmatpush1.msra.mxu0 0.0
  %56 = vmatprep.subr.mxu0 0.0
  %57 = vmatpush1.msra.mxu0 0.0
  %58 = vmatprep.subr.mxu0 0.0
  %59 = vmatpush1.msra.mxu0 0.0
  %60 = vmatprep.subr.mxu0 0.0
  %61 = vmatpush1.msra.mxu0 0.0
  %62 = vmatprep.subr.mxu0 0.0
  %63 = vmatpush1.msra.mxu0 %v12
  %64 = vmatprep.subr.mxu0 0.0
  %65 = vmatpush1.msra.mxu0 %v11
  %66 = vmatprep.subr.mxu0 0.0
  %67 = vmatpush1.msra.mxu0 %v32
  %68 = vmatprep.subr.mxu0 0.0
  %69 = vmatpush1.msra.mxu0 %v31
  %70 = vmatprep.subr.mxu0 0.0
  %71 = vmatpush1.msra.mxu0 %v23
  %72 = vmatprep.subr.mxu0 0.0
  %73 = vmatpush1.msra.mxu0 %v22
  %74 = vmatprep.subr.mxu0 0.0
  %75 = vmatpush2.msra.mxu0 0.0
  %76 = vmatprep.subr.mxu0 0.0
  %77 = vmatpush2.msra.mxu0 0.0
  %78 = vmatprep.subr.mxu0 0.0
  %79 = vmatpush2.msra.mxu0 0.0
  %80 = vmatprep.subr.mxu0 0.0
  %81 = vmatpush2.msra.mxu0 0.0
  %82 = vmatprep.subr.mxu0 0.0
  %83 = vmatpush2.msra.mxu0 0.0
  %84 = vmatprep.subr.mxu0 0.0
  %85 = vmatpush2.msra.mxu0 0.0
  %86 = vmatprep.subr.mxu0 0.0
  %87 = vmatpush2.msra.mxu0 0.0
  %88 = vmatprep.subr.mxu0 0.0
  %89 = vmatpush2.msra.mxu0 0.0
  %90 = vmatprep.subr.mxu0 0.0
  %91 = vmatpush2.msra.mxu0 0.0
  %92 = vmatprep.subr.mxu0 0.0
  %93 = vmatpush2.msra.mxu0 0.0
  %94 = vmatprep.subr.mxu0 0.0
  %95 = vmatpush2.msra.mxu0 0.0
  %96 = vmatprep.subr.mxu0 0.0
  %97 = vmatpush2.msra.mxu0 0.0
  %98 = vmatprep.subr.mxu0 0.0
  %99 = vmatpush2.msra.mxu0 0.0
  %100 = vmatprep.subr.mxu0 0.0
  %101 = vmatpush2.msra.mxu0 0.0
  %102 = vmatprep.subr.mxu0 0.0
  %103 = vmatpush2.msra.mxu0 0.0
  %104 = vmatprep.subr.mxu0 0.0
  %105 = vmatpush2.msra.mxu0 0.0
  %106 = vmatprep.mubr.f32.mxu0 0.0
  %107 = vmatmul.mubr.f32.gmra.mxu0 %v37
  %v108 = vpop.f32.mrf.mxu0
  %v109 = vadd.f32 0.0, %v108
  %v110 = vpop.f32.mrf.mxu0
  %111 = vmatprep.mubr.f32.mxu0 0.0
  %112 = vmatmul.mubr.f32.gmra.mxu0 %v40
  %v113 = vpop.f32.mrf.mxu0
  %v114 = vadd.f32 0.0, %v113
  %v115 = vpop.f32.mrf.mxu0
  %116 = vdwg.mxu0
  %v117 = vxor.u32 %v109, 2147483648
  %v118 = vxor.u32 %v114, 2147483648
  %v119 = vmul.f32 %v117, 1.442695
  %v120 = vpow.pop %v119
  %v121 = vmul.f32 %v118, 1.442695
  %v122 = vpow.pop %v121
  %v123 = vadd.f32 %v120, 1.0
  %v124 = vadd.f32 %v122, 1.0
  %v125 = vrcp.pop %v123
  %v126 = vmul.f32 1.0, %v125
  %v127 = vrcp.pop %v124
  %v128 = vmul.f32 1.0, %v127
  %129 = vst [vmem:[%s2] sm:$0xff] %v126
  %130 = vst [vmem:[%s2 + $0x8] sm:$0xff] %v128
  // Predicated region
  $region10: #{model_forward.1} parent=0 // pred_check
    _
  $region11: #{model_forward.1} parent=0 // pred_check_branch
    %132 = sbr.rel (0) target = $region13
  $region12: #{model_forward.1} parent=0 // pred_region
    _
  $region13: #{model_forward.1} parent=0 // pred_fallthru
    _
  // Predicated region
  $region14: #{model_forward.1} parent=0 // pred_check
    _
  $region15: #{model_forward.1} parent=0 // pred_check_branch
    %134 = sbr.rel (0) target = $region17
  $region16: #{model_forward.1} parent=0 // pred_region
    _
  $region17: #{model_forward.1} parent=0 // pred_fallthru
    _

</llo_original>
